<compile_context>
chip_gen: v5e
topology: v5e:2x2
jax: 0.10.0
libtpu: 0.0.40
codegen_flags: <defaults>
</compile_context>

<pallas_src>
import math

import jax
import jax.numpy as jnp
from jax.experimental import pallas as pl
from jax.experimental.pallas import tpu as pltpu


def _tile_cap_bytes() -> int:
    """~2 MiB tiles sit on the HBM-roofline plateau on v5e/v6e; v7x (64 MiB VMEM
    per TC, ~3.2 TB/s HBM) amortizes per-step overhead better with ~4 MiB."""
    cap = 2 * 1024 * 1024
    try:
        info = pltpu.get_tpu_info()
        if info.vmem_capacity_bytes <= 64 * 1024 * 1024:  # v7x-class TensorCore
            cap = 4 * 1024 * 1024
    except Exception:
        pass
    return cap


def _sublane_multiple(itemsize: int) -> int:
    # Packed dtypes need coarser second-minor granularity: f32 -> 8, bf16 -> 16,
    # int8/fp8 -> 32.
    return {4: 8, 2: 16, 1: 32}.get(itemsize, 8)


def _largest_divisor_multiple(n: int, step: int, upper: int) -> int:
    """Largest divisor of n that is a multiple of `step` and <= upper (0 if none)."""
    best = 0
    cand = step
    limit = min(n, upper)
    while cand <= limit:
        if n % cand == 0:
            best = cand
        cand += step
    return best


def _build_pe(max_len: int, d_model: int, dtype=jnp.float32) -> jnp.ndarray:
    """Deterministic positional-encoding table, matches the PyTorch __init__.
    Built directly in the compute dtype so no per-call cast is needed."""
    position = jnp.arange(0.0, max_len, dtype=jnp.float32)[:, None]           # (L, 1)
    div_term = jnp.exp(
        jnp.arange(0.0, d_model, 2, dtype=jnp.float32)
        * -(math.log(10000.0) / float(d_model))
    )                                                                           # (ceil(D/2),)
    angles = position * div_term                                                # (L, ceil(D/2))
    pe = jnp.zeros((max_len, d_model), dtype=jnp.float32)
    pe = pe.at[:, 0::2].set(jnp.sin(angles))
    pe = pe.at[:, 1::2].set(jnp.cos(angles)[:, : d_model // 2])
    return pe[None, :, :].astype(dtype)                                        # (1, L, D)


def _pe_add_kernel(x_ref, pe_ref, o_ref):
    # x_ref: (TB, TL, D) or (TB, TN); pe_ref: (1, TL, D) or (1, TN).
    # jnp broadcasting handles the batch axis.
    o_ref[...] = x_ref[...] + pe_ref[...]


def _choose_seq_tile(L: int, D: int, itemsize: int, cap: int) -> int:
    """3-D path: full L if it fits (or L is not a multiple of the sublane
    granularity); otherwise the largest granular divisor under the byte cap."""
    sub = _sublane_multiple(itemsize)
    row_bytes = D * itemsize
    if L * row_bytes <= cap or L % sub != 0:
        return L
    max_tl = (cap // row_bytes) // sub * sub
    tl = _largest_divisor_multiple(L, sub, max_tl) if max_tl >= sub else 0
    # TODO(synk): masked tail block for awkward L (prime multiples of sub) instead
    # of falling back to the full axis.
    return tl if tl else L


def _choose_batch_tile(B: int, tile_row_bytes: int, cap: int) -> int:
    if tile_row_bytes >= cap:
        return 1
    max_tb = max(1, cap // tile_row_bytes)
    return _largest_divisor_multiple(B, 1, max_tb) or 1


def positional_encoding_forward(x: jnp.ndarray, pe: jnp.ndarray) -> jnp.ndarray:
    """x: (B, max_len, d_model); pe: (1, max_len, d_model).  Matches the PyTorch
    forward (adds the full pe table, so seq_len must equal max_len)."""
    B, L, D = x.shape
    assert pe.shape == (1, L, D), "PositionalEncoding adds the full pe table"
    if pe.dtype != x.dtype:
        # Prefer building pe in x.dtype once (see _build_pe); this is a guard only.
        pe = pe.astype(x.dtype)

    itemsize = jnp.dtype(x.dtype).itemsize
    cap = _tile_cap_bytes()

    lane_dense_3d = (D % 128 == 0) and D >= 128

    if lane_dense_3d:
        tl = _choose_seq_tile(L, D, itemsize, cap)
        tb = _choose_batch_tile(B, tl * D * itemsize, cap)
        seq_steps = L // tl
        # Megacore split only if the grid would otherwise be a single step.
        if seq_steps == 1 and B // tb == 1 and B % 2 == 0:
            tb = B // 2
        grid = (seq_steps, B // tb)                        # batch innermost -> pe reused
        in_specs = [
            pl.BlockSpec((tb, tl, D), lambda l, b: (b, l, 0)),   # x tile
            pl.BlockSpec((1, tl, D), lambda l, b: (0, l, 0)),    # pe, batch-invariant
        ]
        out_spec = pl.BlockSpec((tb, tl, D), lambda l, b: (b, l, 0))
        x_in, pe_in = x, pe
        out_shape = jax.ShapeDtypeStruct((B, L, D), x.dtype)
        tile_bytes = tb * tl * D * itemsize
        pe_tile_bytes = tl * D * itemsize
    else:
        # Narrow / unaligned d_model: fold (L, D) into the lane axis so the
        # output stores are unmasked full-width vst instead of masked partials.
        N = L * D
        x_in = x.reshape(B, N)
        pe_in = pe.reshape(1, N)
        sub = 8
        if B % sub == 0:
            max_tb = max(sub, (cap // max(1, N * itemsize)) // sub * sub)
            tb = _largest_divisor_multiple(B, sub, max_tb) or sub
        else:
            tb = B                                        # full dim -> always a legal block
        if tb * N * itemsize <= cap or N % 128 != 0:
            tn = N
        else:
            max_tn = (cap // (tb * itemsize)) // 128 * 128
            tn = (_largest_divisor_multiple(N, 128, max_tn) if max_tn >= 128 else 0) or N
        col_steps = N // tn
        if (col_steps == 1 and B // tb == 1 and B % 2 == 0 and (B // 2) % sub == 0):
            tb = B // 2                                   # megacore split, block stays legal
        grid = (col_steps, B // tb)                       # batch innermost -> pe reused
        in_specs = [
            pl.BlockSpec((tb, tn), lambda c, b: (b, c)),
            pl.BlockSpec((1, tn), lambda c, b: (0, c)),
        ]
        out_spec = pl.BlockSpec((tb, tn), lambda c, b: (b, c))
        out_shape = jax.ShapeDtypeStruct((B, N), x.dtype)
        tile_bytes = tb * tn * itemsize
        pe_tile_bytes = tn * itemsize

    # Double-buffered x + out + pe, plus headroom.
    vmem_limit = max(32 * 1024 * 1024, 2 * (2 * tile_bytes + pe_tile_bytes) + (4 << 20))

    out = pl.pallas_call(
        _pe_add_kernel,
        out_shape=out_shape,
        grid_spec=pl.GridSpec(grid=grid, in_specs=in_specs, out_specs=out_spec),
        compiler_params=pltpu.CompilerParams(
            dimension_semantics=("parallel", "parallel"),
            vmem_limit_bytes=vmem_limit,
        ),
    )(x_in, pe_in)

    return out if lane_dense_3d else out.reshape(B, L, D)


if __name__ == "__main__":
    # Small shapes consistent with the module (module defaults d_model=1024,
    # max_len=49 — scaled down for the synthetic test).
    batch, max_len, d_model = 2, 8, 32

    key = jax.random.PRNGKey(0)
    x = jax.random.normal(key, (batch, max_len, d_model), dtype=jnp.float32)
    pe = _build_pe(max_len, d_model, dtype=x.dtype)   # built once in compute dtype

    ref = x + pe
    out = jax.block_until_ready(positional_encoding_forward(x, pe))
    assert out.shape == (batch, max_len, d_model)
    assert jnp.allclose(out, ref, atol=1e-6), "mismatch vs reference (2-D lane-dense path)"

    # Also exercise the 3-D path (d_model a multiple of 128).
    d2 = 128
    x2 = jax.random.normal(jax.random.PRNGKey(0), (batch, max_len, d2), dtype=jnp.float32)
    pe2 = _build_pe(max_len, d2, dtype=x2.dtype)
    out2 = jax.block_until_ready(positional_encoding_forward(x2, pe2))
    assert jnp.allclose(out2, x2 + pe2, atol=1e-6), "mismatch vs reference (3-D path)"

    print("KERNEL_OK")
</pallas_src>

<mosaic_0001>
module attributes {stable_mosaic.version = 11 : i64} {
  func.func @_pe_add_kernel(%arg0: i32, %arg1: i32, %arg2: memref<2x256xf32, #tpu.memory_space<vmem>>, %arg3: memref<1x256xf32, #tpu.memory_space<vmem>>, %arg4: memref<2x256xf32, #tpu.memory_space<vmem>>) attributes {dimension_semantics = [#tpu.dimension_semantics<parallel>, #tpu.dimension_semantics<parallel>], iteration_bounds = array<i64: 1, 1>, scalar_prefetch = 0 : i64, scratch_operands = 0 : i64, tpu.core_type = #tpu.core_type<tc>, window_params = [{transform_indices = @transform_0, window_bounds = array<i64: 2, 256>}, {transform_indices = @transform_1, window_bounds = array<i64: 1, 256>}, {transform_indices = @transform_2, window_bounds = array<i64: 2, 256>}]} {
    %c0 = arith.constant 0 : index
    %c0_0 = arith.constant 0 : index
    %0 = vector.load %arg2[%c0, %c0_0] : memref<2x256xf32, #tpu.memory_space<vmem>>, vector<2x256xf32>
    %c0_1 = arith.constant 0 : index
    %c0_2 = arith.constant 0 : index
    %1 = vector.load %arg3[%c0_1, %c0_2] : memref<1x256xf32, #tpu.memory_space<vmem>>, vector<1x256xf32>
    %2 = vector.broadcast %1 : vector<1x256xf32> to vector<2x256xf32>
    %3 = arith.addf %0, %2 : vector<2x256xf32>
    %c0_3 = arith.constant 0 : index
    %c0_4 = arith.constant 0 : index
    %4 = vector.load %arg4[%c0_3, %c0_4] : memref<2x256xf32, #tpu.memory_space<vmem>>, vector<2x256xf32>
    tpu.vector_store %arg4[%c0_3, %c0_4], %3 {strides = array<i32>} : memref<2x256xf32, #tpu.memory_space<vmem>>, vector<2x256xf32>,
    return
  }
  func.func @transform_0(%arg0: i32, %arg1: i32) -> (i32, i32) {
    %c0_i32 = arith.constant 0 : i32
    return %arg1, %arg0 : i32, i32
  }
  func.func @transform_1(%arg0: i32, %arg1: i32) -> (i32, i32) {
    %c0_i32 = arith.constant 0 : i32
    %c0_i32_0 = arith.constant 0 : i32
    return %c0_i32, %arg0 : i32, i32
  }
  func.func @transform_2(%arg0: i32, %arg1: i32) -> (i32, i32) {
    %c0_i32 = arith.constant 0 : i32
    return %arg1, %arg0 : i32, i32
  }
}

</mosaic_0001>

<llo_original>
// kernel: tpu_custom_call.1
$region0: #{tpu_custom_call.1}
  #allocation0 [shape = 'u32[]', space=smem, size = 0x4, offset = 0x4, fixed_abs, tag = 'smem constant byte address 0x4 - core index']
  #allocation1 [shape = 'u32[72,128]{1,0:T(1,128)}', space=vmem, size = 0x9000, scoped, tag = 'internal scratch']
  %s0 = inlined_call_operand.hbm [shape: f32[2,256], index: 0, kind: input, shape index: {}]
  %s1 = inlined_call_operand.hbm [shape: f32[1,256], index: 1, kind: input, shape index: {}]
  %s2 = inlined_call_operand.hbm [shape: f32[2,256], index: 2, kind: output, shape index: {}]
  %s3 = sld [smem:[#allocation0]]
  $region26: #{tpu_custom_call.1} parent=0
    _
  %s5 = ssub.s32 1, %s3
  %s6 = scalar_select 0, %s5, %s3
  $region1: #{tpu_custom_call.1} parent=0
    #allocation2 [shape = 'u8[2048]{0}', space=vmem, size = 0x800, scoped, tag = 'input window, operand 0, single buffered']
    #allocation3 [shape = 's32[1]{0}', space=sflag, size = 0x4, scoped, tag = 'scoped memory for tpu_custom_call.1']
    #allocation4 [shape = 's32[1]{0}', space=sflag, size = 0x4, scoped, tag = 'scoped memory for tpu_custom_call.1']
    #allocation5 [shape = 'u8[1024]{0}', space=vmem, size = 0x400, scoped, tag = 'input window, operand 1, single buffered']
    #allocation6 [shape = 's32[1]{0}', space=sflag, size = 0x4, scoped, tag = 'scoped memory for tpu_custom_call.1']
    #allocation7 [shape = 'u8[2048]{0}', space=vmem, size = 0x800, scoped, tag = 'output window, operand 0, single buffered']
    %7 = vsyncpa [#allocation3], 0
    %8 = vsyncpa [#allocation6], 0
    %9 = vsyncpa [#allocation4], 0
    // Predicated region
    $region2: #{tpu_custom_call.1} parent=1 // pred_check
      _
    $region3: #{tpu_custom_call.1} parent=1 // pred_check_branch
      %11 = sbr.rel (0) target = $region5
    $region4: #{tpu_custom_call.1} parent=1 // pred_region
      %13 = vsyncadd [#allocation3], 0
      %s15 = sshll.u32 %s0, 4
      %s16 = int_to_ptr.hbm [resolvable:$true] %s15
      %s17 = sshll.u32 [#allocation2], 4
      %s18 = int_to_ptr.vmem [resolvable:$true] %s17
      %20 = dma.hbm_to_vmem [thread:$0]  %s16, 64, %s18, [#allocation3]
    $region5: #{tpu_custom_call.1} parent=1 // pred_fallthru
      _
    // Predicated region
    $region6: #{tpu_custom_call.1} parent=1 // pred_check
      _
    $region7: #{tpu_custom_call.1} parent=1 // pred_check_branch
      %22 = sbr.rel (0) target = $region9
    $region8: #{tpu_custom_call.1} parent=1 // pred_region
      %24 = vsyncadd [#allocation6], 0
      %s26 = sshll.u32 %s1, 4
      %s27 = int_to_ptr.hbm [resolvable:$true] %s26
      %s28 = sshll.u32 [#allocation5], 4
      %s29 = int_to_ptr.vmem [resolvable:$true] %s28
      %31 = dma.hbm_to_vmem [thread:$0]  %s27, 32, %s29, [#allocation6]
    $region9: #{tpu_custom_call.1} parent=1 // pred_fallthru
      _
    // Predicated region
    $region10: #{tpu_custom_call.1} parent=1 // pred_check
      _
    $region11: #{tpu_custom_call.1} parent=1 // pred_check_branch
      %33 = sbr.rel (0) target = $region13
    $region12: #{tpu_custom_call.1} parent=1 // pred_region
      %35 = dma.done [#allocation3], 64
    $region13: #{tpu_custom_call.1} parent=1 // pred_fallthru
      _
    // Predicated region
    $region14: #{tpu_custom_call.1} parent=1 // pred_check
      _
    $region15: #{tpu_custom_call.1} parent=1 // pred_check_branch
      %37 = sbr.rel (0) target = $region17
    $region16: #{tpu_custom_call.1} parent=1 // pred_region
      %39 = dma.done [#allocation6], 32
    $region17: #{tpu_custom_call.1} parent=1 // pred_fallthru
      _
    %v40 = vld [vmem:[#allocation2] sm:$0xf]
    %v41 = vld [vmem:[#allocation5] sm:$0x3]
    %v43 = vperm.slane %v41, 0
    %v44 = vperm.slane %v41, 1
    %v45 = vrot.slane %v44, 6
    %vm46 = vcmask 1041408
    %v47 = vsel %vm46, %v43, %v45
    %v49 = vadd.f32 %v40, %v47
    %50 = vst [vmem:[#allocation7] sm:$0xf] %v49
    // Predicated region
    $region18: #{tpu_custom_call.1} parent=1 // pred_check
      _
    $region19: #{tpu_custom_call.1} parent=1 // pred_check_branch
      %52 = sbr.rel (0) target = $region21
    $region20: #{tpu_custom_call.1} parent=1 // pred_region
      %54 = vsyncadd [#allocation4], 0
      %s56 = sshll.u32 [#allocation7], 4
      %s57 = int_to_ptr.vmem [resolvable:$true] %s56
      %s58 = sshll.u32 %s2, 4
      %s59 = int_to_ptr.hbm [resolvable:$true] %s58
      %61 = dma.vmem_to_hbm [thread:$0]  %s57, 64, %s59, [#allocation4]
    $region21: #{tpu_custom_call.1} parent=1 // pred_fallthru
      _
    // Predicated region
    $region22: #{tpu_custom_call.1} parent=1 // pred_check
      _
    $region23: #{tpu_custom_call.1} parent=1 // pred_check_branch
      %63 = sbr.rel (0) target = $region25
    $region24: #{tpu_custom_call.1} parent=1 // pred_region
      %65 = dma.done [#allocation4], 64
    $region25: #{tpu_custom_call.1} parent=1 // pred_fallthru
      _
    %66 = vsyncpa [#allocation3], 1
    %67 = vsyncpa [#allocation6], 1
    %68 = vsyncpa [#allocation4], 1

</llo_original>
